<compile_context>
chip_gen: v5e
topology: v5e:2x2
jax: 0.10.0
libtpu: 0.0.40
codegen_flags: <defaults>
</compile_context>

<pallas_src>
import functools

import numpy as np
import jax
import jax.numpy as jnp
from jax.experimental import pallas as pl
from jax.experimental.pallas import tpu as pltpu


# ---------------------------------------------------------------------------
# Deterministic "parameters": the cubic downsampling taps (same as the module)
# ---------------------------------------------------------------------------
def _cubic(x):
    # Standard Keys cubic (a = -0.5), matches utils.cubic
    absx = np.abs(x)
    absx2 = absx ** 2
    absx3 = absx ** 3
    f1 = (1.5 * absx3 - 2.5 * absx2 + 1.0) * (absx <= 1)
    f2 = (-0.5 * absx3 + 2.5 * absx2 - 4.0 * absx + 2.0) * ((absx > 1) & (absx <= 2))
    return f1 + f2


def cubic_down(s):
    if s == 2:
        b = 7 / 4.0
        B = np.abs(np.linspace(-b, b, 8))
    elif s == 3:
        b = 5 / 3.0
        B = np.linspace(-b, b, 11)
    elif s == 4:
        b = 15 / 8.0
        B = np.linspace(-b, b, 16)
    else:
        raise ValueError("scale must be 2, 3, or 4")
    A = _cubic(B)
    return (A / np.sum(A)).astype(np.float32)


def _pad_amount(K, scale):
    return (K + 1) // 2 - 1 - (scale - 1) // 2


def _conv_matrix_folded(w, n, pad, stride):
    """Dense strided-conv matrix with replication padding folded in.

    A[o, j] = sum_k w[k] * [ clip(o*stride + k - pad, 0, n-1) == j ]
    so that  A @ x == strided_conv1d(replication_pad(x, pad), w).
    """
    K = w.shape[0]
    n_out = (n + 2 * pad - K) // stride + 1
    o = np.arange(n_out)[:, None]                    # (n_out, 1)
    k = np.arange(K)[None, :]                        # (1, K)
    src = np.clip(o * stride + k - pad, 0, n - 1)    # (n_out, K)
    A = np.zeros((n_out, n), np.float32)
    np.add.at(A, (np.broadcast_to(o, src.shape), src),
              np.broadcast_to(w[None, :], src.shape))
    return A, n_out


# ---------------------------------------------------------------------------
# Pallas kernel: TBC planes -> TBC output planes via two large MXU matmuls
# ---------------------------------------------------------------------------
def _downsample_kernel(x_ref, axT_ref, ayT_ref, o_ref, *, tbc, H, Ho, Wo):
    # x_ref block: (1, tbc*H, W) -- BC already folded into the matmul M-dim.
    x2 = x_ref[0]                                                        # (tbc*H, W)
    # Horizontal strided conv (padding folded into A_x): (tbc*H, W) @ (W, Wo)
    t = jnp.dot(x2, axT_ref[...], preferred_element_type=jnp.float32)    # (tbc*H, Wo)
    # Re-fold BC into M for the vertical conv: (tbc, H, Wo) -> (tbc*Wo, H).
    t = jnp.swapaxes(t.reshape(tbc, H, Wo), 1, 2).reshape(tbc * Wo, H)
    # Vertical strided conv: (tbc*Wo, H) @ (H, Ho)
    o2 = jnp.dot(t, ayT_ref[...], preferred_element_type=jnp.float32)    # (tbc*Wo, Ho)
    o3 = jnp.swapaxes(o2.reshape(tbc, Wo, Ho), 1, 2)                     # (tbc, Ho, Wo)
    o_ref[...] = o3.astype(o_ref.dtype)


def _choose_tbc(BC, H, W, Ho, Wo, budget_bytes=24 * 1024 * 1024):
    # Rough per-plane live VMEM: double-buffered input & output tiles plus the f32
    # intermediates of the two matmuls and their transposes.
    per_plane = 4 * (2 * H * W + 2 * Ho * Wo + 2 * H * Wo + 2 * Wo * Ho)
    tbc = max(1, budget_bytes // max(per_plane, 1))
    tbc = int(min(tbc, BC, 256))
    if tbc >= 8:
        tbc = (tbc // 8) * 8          # sublane-friendly output block leading dim
    return max(tbc, 1)


def downsample(x, scale):
    """x: (B, C, H, W) float32 (NCHW). Matches DownSample(scale).forward(x)."""
    assert scale in (2, 3, 4)
    w = cubic_down(scale)
    K = w.shape[0]
    pad = _pad_amount(K, scale)

    B, C, H, W = x.shape
    A_y, Ho = _conv_matrix_folded(w, H, pad, scale)   # (Ho, H)
    A_x, Wo = _conv_matrix_folded(w, W, pad, scale)   # (Wo, W)
    A_yT = jnp.asarray(A_y.T)                         # (H, Ho)
    A_xT = jnp.asarray(A_x.T)                         # (W, Wo)

    BC = B * C
    tbc = _choose_tbc(BC, H, W, Ho, Wo)
    n_blocks = -(-BC // tbc)
    BC_pad = n_blocks * tbc

    x_flat = x.reshape(BC, H, W)
    if BC_pad != BC:
        x_flat = jnp.concatenate(
            [x_flat, jnp.zeros((BC_pad - BC, H, W), x.dtype)], axis=0)
    # Group tbc consecutive planes and fold them into the matmul M-dim (free reshape).
    x_blocks = x_flat.reshape(n_blocks, tbc * H, W)

    need = (4 * tbc * (2 * H * W + 2 * Ho * Wo + 2 * H * Wo + 2 * Wo * Ho)
            + 4 * 2 * (H * Ho + W * Wo))
    vmem_limit = int(min(max(need * 5 // 4, 32 * 1024 * 1024), 96 * 1024 * 1024))

    kernel = functools.partial(_downsample_kernel, tbc=tbc, H=H, Ho=Ho, Wo=Wo)

    out = pl.pallas_call(
        kernel,
        out_shape=jax.ShapeDtypeStruct((BC_pad, Ho, Wo), x.dtype),
        grid=(n_blocks,),
        in_specs=[
            pl.BlockSpec((1, tbc * H, W), lambda i: (i, 0, 0)),
            pl.BlockSpec((W, Wo), lambda i: (0, 0)),   # A_x^T: VMEM-resident
            pl.BlockSpec((H, Ho), lambda i: (0, 0)),   # A_y^T: VMEM-resident
        ],
        out_specs=pl.BlockSpec((tbc, Ho, Wo), lambda i: (i, 0, 0)),
        compiler_params=pltpu.CompilerParams(
            dimension_semantics=("parallel",),
            vmem_limit_bytes=vmem_limit,
        ),
    )(x_blocks, A_xT, A_yT)

    return out[:BC].reshape(B, C, Ho, Wo)


# ---------------------------------------------------------------------------
# Pure-JAX reference (explicit replication pad + strided separable conv)
# ---------------------------------------------------------------------------
def _reference(x, scale):
    w = cubic_down(scale)
    K = w.shape[0]
    pad = _pad_amount(K, scale)
    xp = jnp.pad(x, ((0, 0), (0, 0), (pad, pad), (pad, pad)), mode="edge")
    Hp, Wp = xp.shape[2], xp.shape[3]
    Ho = (Hp - K) // scale + 1
    Wo = (Wp - K) // scale + 1
    xh = sum(w[k] * xp[:, :, :, k:k + scale * (Wo - 1) + 1:scale] for k in range(K))
    out = sum(w[k] * xh[:, :, k:k + scale * (Ho - 1) + 1:scale, :] for k in range(K))
    return out


if __name__ == "__main__":
    key = jax.random.PRNGKey(0)
    cases = [((2, 4, 16, 16), 2), ((2, 4, 24, 24), 3), ((2, 4, 32, 32), 4)]
    for shape, scale in cases:
        key, sub = jax.random.split(key)
        x = jax.random.normal(sub, shape, dtype=jnp.float32)
        out = jax.block_until_ready(downsample(x, scale))
        ref = _reference(x, scale)
        assert out.shape == ref.shape, (out.shape, ref.shape)
        np.testing.assert_allclose(np.asarray(out), np.asarray(ref),
                                   rtol=1e-5, atol=1e-5)
    print("KERNEL_OK")
</pallas_src>

<mosaic_0001>
module attributes {stable_mosaic.version = 11 : i64} {
  func.func @_downsample_kernel(%arg0: i32, %arg1: memref<1x128x16xf32, #tpu.memory_space<vmem>>, %arg2: memref<16x8xf32, #tpu.memory_space<vmem>>, %arg3: memref<16x8xf32, #tpu.memory_space<vmem>>, %arg4: memref<8x8x8xf32, #tpu.memory_space<vmem>>) attributes {dimension_semantics = [#tpu.dimension_semantics<parallel>], iteration_bounds = array<i64: 1>, scalar_prefetch = 0 : i64, scratch_operands = 0 : i64, tpu.core_type = #tpu.core_type<tc>, window_params = [{transform_indices = @transform_0, window_bounds = array<i64: 1, 128, 16>}, {pipeline_mode = #tpu.pipeline_mode<synchronous>, transform_indices = @transform_1, window_bounds = array<i64: 16, 8>}, {pipeline_mode = #tpu.pipeline_mode<synchronous>, transform_indices = @transform_2, window_bounds = array<i64: 16, 8>}, {transform_indices = @transform_3, window_bounds = array<i64: 8, 8, 8>}]} {
    %c0 = arith.constant 0 : index
    %c0_0 = arith.constant 0 : index
    %c0_1 = arith.constant 0 : index
    %0 = vector.load %arg1[%c0, %c0_0, %c0_1] : memref<1x128x16xf32, #tpu.memory_space<vmem>>, vector<1x128x16xf32>
    %1 = vector.shape_cast %0 : vector<1x128x16xf32> to vector<128x16xf32>
    %c0_2 = arith.constant 0 : index
    %c0_3 = arith.constant 0 : index
    %2 = vector.load %arg2[%c0_2, %c0_3] : memref<16x8xf32, #tpu.memory_space<vmem>>, vector<16x8xf32>
    %cst = arith.constant dense<0.000000e+00> : vector<128x8xf32>
    %3 = tpu.matmul %1, %2, %cst {dimension_numbers = #tpu.dot_dimension_numbers<[1], [0], [0], [1], [0, 0, 1, 1], [], []>} : vector<128x16xf32>, vector<16x8xf32>, vector<128x8xf32> -> vector<128x8xf32>
    %4 = vector.shape_cast %3 : vector<128x8xf32> to vector<8x16x8xf32>
    %5 = tpu.transpose %4, [0, 2, 1] : vector<8x16x8xf32> -> vector<8x8x16xf32>
    %6 = vector.shape_cast %5 : vector<8x8x16xf32> to vector<64x16xf32>
    %c0_4 = arith.constant 0 : index
    %c0_5 = arith.constant 0 : index
    %7 = vector.load %arg3[%c0_4, %c0_5] : memref<16x8xf32, #tpu.memory_space<vmem>>, vector<16x8xf32>
    %cst_6 = arith.constant dense<0.000000e+00> : vector<64x8xf32>
    %8 = tpu.matmul %6, %7, %cst_6 {dimension_numbers = #tpu.dot_dimension_numbers<[1], [0], [0], [1], [0, 0, 1, 1], [], []>} : vector<64x16xf32>, vector<16x8xf32>, vector<64x8xf32> -> vector<64x8xf32>
    %9 = vector.shape_cast %8 : vector<64x8xf32> to vector<8x8x8xf32>
    %10 = tpu.transpose %9, [0, 2, 1] : vector<8x8x8xf32> -> vector<8x8x8xf32>
    %c0_7 = arith.constant 0 : index
    %c0_8 = arith.constant 0 : index
    %c0_9 = arith.constant 0 : index
    %11 = vector.load %arg4[%c0_7, %c0_8, %c0_9] : memref<8x8x8xf32, #tpu.memory_space<vmem>>, vector<8x8x8xf32>
    tpu.vector_store %arg4[%c0_7, %c0_8, %c0_9], %10 {strides = array<i32>} : memref<8x8x8xf32, #tpu.memory_space<vmem>>, vector<8x8x8xf32>,
    return
  }
  func.func @transform_0(%arg0: i32) -> (i32, i32, i32) {
    %c0_i32 = arith.constant 0 : i32
    %c0_i32_0 = arith.constant 0 : i32
    %c0_i32_1 = arith.constant 0 : i32
    return %arg0, %c0_i32, %c0_i32_0 : i32, i32, i32
  }
  func.func @transform_1(%arg0: i32) -> (i32, i32) {
    %c0_i32 = arith.constant 0 : i32
    %c0_i32_0 = arith.constant 0 : i32
    %c0_i32_1 = arith.constant 0 : i32
    return %c0_i32, %c0_i32_0 : i32, i32
  }
  func.func @transform_2(%arg0: i32) -> (i32, i32) {
    %c0_i32 = arith.constant 0 : i32
    %c0_i32_0 = arith.constant 0 : i32
    %c0_i32_1 = arith.constant 0 : i32
    return %c0_i32, %c0_i32_0 : i32, i32
  }
  func.func @transform_3(%arg0: i32) -> (i32, i32, i32) {
    %c0_i32 = arith.constant 0 : i32
    %c0_i32_0 = arith.constant 0 : i32
    %c0_i32_1 = arith.constant 0 : i32
    return %arg0, %c0_i32, %c0_i32_0 : i32, i32, i32
  }
}

</mosaic_0001>

<llo_original>
// kernel: tpu_custom_call.1
$region0: #{tpu_custom_call.1}
  #allocation0 [shape = 'u32[]', space=smem, size = 0x4, offset = 0x4, fixed_abs, tag = 'smem constant byte address 0x4 - core index']
  #allocation1 [shape = 'u32[72,128]{1,0:T(1,128)}', space=vmem, size = 0x9000, scoped, tag = 'internal scratch']
  %s0 = inlined_call_operand.vmem [shape: f32[1,128,16], index: 0, kind: input, shape index: {}]
  %s1 = inlined_call_operand.vmem [shape: f32[16,8], index: 1, kind: input, shape index: {}]
  %s2 = inlined_call_operand.vmem [shape: f32[16,8], index: 2, kind: input, shape index: {}]
  %s3 = inlined_call_operand.hbm [shape: f32[8,8,8], index: 3, kind: output, shape index: {}]
  %s4 = sld [smem:[#allocation0]]
  $region22: #{tpu_custom_call.1} parent=0
    _
  %s6 = ssub.s32 1, %s4
  %s7 = scalar_select 0, %s6, %s4
  $region1: #{tpu_custom_call.1} parent=0
    #allocation2 [shape = 'u8[32768]{0}', space=vmem, size = 0x8000, scoped, tag = 'output window, operand 0, single buffered']
    #allocation3 [shape = 's32[1]{0}', space=sflag, size = 0x4, scoped, tag = 'scoped memory for tpu_custom_call.1']
    %8 = vsyncpa [#allocation3], 0
    // Predicated region
    $region2: #{tpu_custom_call.1} parent=1 // pred_check
      _
    $region3: #{tpu_custom_call.1} parent=1 // pred_check_branch
      %10 = sbr.rel (0) target = $region5
    $region4: #{tpu_custom_call.1} parent=1 // pred_region
      _
    $region5: #{tpu_custom_call.1} parent=1 // pred_fallthru
      _
    // Predicated region
    $region6: #{tpu_custom_call.1} parent=1 // pred_check
      _
    $region7: #{tpu_custom_call.1} parent=1 // pred_check_branch
      %12 = sbr.rel (0) target = $region9
    $region8: #{tpu_custom_call.1} parent=1 // pred_region
      _
    $region9: #{tpu_custom_call.1} parent=1 // pred_fallthru
      _
    // Predicated region
    $region10: #{tpu_custom_call.1} parent=1 // pred_check
      _
    $region11: #{tpu_custom_call.1} parent=1 // pred_check_branch
      %14 = sbr.rel (0) target = $region13
    $region12: #{tpu_custom_call.1} parent=1 // pred_region
      _
    $region13: #{tpu_custom_call.1} parent=1 // pred_fallthru
      _
    %v15 = vld [vmem:[%s0] sm:$0xff]
    %v16 = vld [vmem:[%s0 + $0x8] sm:$0xff]
    %v17 = vld [vmem:[%s0 + $0x10] sm:$0xff]
    %v18 = vld [vmem:[%s0 + $0x18] sm:$0xff]
    %v19 = vld [vmem:[%s0 + $0x20] sm:$0xff]
    %v20 = vld [vmem:[%s0 + $0x28] sm:$0xff]
    %v21 = vld [vmem:[%s0 + $0x30] sm:$0xff]
    %v22 = vld [vmem:[%s0 + $0x38] sm:$0xff]
    %v23 = vld [vmem:[%s0 + $0x40] sm:$0xff]
    %v24 = vld [vmem:[%s0 + $0x48] sm:$0xff]
    %v25 = vld [vmem:[%s0 + $0x50] sm:$0xff]
    %v26 = vld [vmem:[%s0 + $0x58] sm:$0xff]
    %v27 = vld [vmem:[%s0 + $0x60] sm:$0xff]
    %v28 = vld [vmem:[%s0 + $0x68] sm:$0xff]
    %v29 = vld [vmem:[%s0 + $0x70] sm:$0xff]
    %v30 = vld [vmem:[%s0 + $0x78] sm:$0xff]
    %v31 = vld [vmem:[%s1] sm:$0xff]
    %v32 = vld [vmem:[%s1 + $0x8] sm:$0xff]
    %vm33 = vcmask 130048
    %v35 = vsel %vm33, %v15, 0
    %v38 = vsel %vm33, %v16, 0
    %v41 = vsel %vm33, %v17, 0
    %v44 = vsel %vm33, %v18, 0
    %v47 = vsel %vm33, %v19, 0
    %v50 = vsel %vm33, %v20, 0
    %v53 = vsel %vm33, %v21, 0
    %v56 = vsel %vm33, %v22, 0
    %v59 = vsel %vm33, %v23, 0
    %v62 = vsel %vm33, %v24, 0
    %v65 = vsel %vm33, %v25, 0
    %v68 = vsel %vm33, %v26, 0
    %v71 = vsel %vm33, %v27, 0
    %v74 = vsel %vm33, %v28, 0
    %v77 = vsel %vm33, %v29, 0
    %v80 = vsel %vm33, %v30, 0
    %82 = vmatpush.msra.mxu0 0.0
    %83 = vmatpush.msra.mxu0 0.0
    %84 = vmatpush.msra.mxu0 0.0
    %85 = vmatpush.msra.mxu0 0.0
    %86 = vmatpush.msra.mxu0 0.0
    %87 = vmatpush.msra.mxu0 0.0
    %88 = vmatpush.msra.mxu0 0.0
    %89 = vmatpush.msra.mxu0 0.0
    %90 = vmatpush.msra.mxu0 0.0
    %91 = vmatpush.msra.mxu0 0.0
    %92 = vmatpush.msra.mxu0 0.0
    %93 = vmatpush.msra.mxu0 0.0
    %94 = vmatpush.msra.mxu0 0.0
    %95 = vmatpush.msra.mxu0 0.0
    %96 = vmatpush.msra.mxu0 %v32
    %97 = vmatpush.msra.mxu0 %v31
    %98 = vmatmul.f32.gmra.mxu0 %v35
    %v99 = vpop.f32.mrf.mxu0
    %v100 = vadd.f32 0.0, %v99
    %101 = vmatmul.f32.gmra.mxu0 %v38
    %v102 = vpop.f32.mrf.mxu0
    %v103 = vadd.f32 0.0, %v102
    %104 = vmatmul.f32.gmra.mxu0 %v41
    %v105 = vpop.f32.mrf.mxu0
    %v106 = vadd.f32 0.0, %v105
    %107 = vmatmul.f32.gmra.mxu0 %v44
    %v108 = vpop.f32.mrf.mxu0
    %v109 = vadd.f32 0.0, %v108
    %110 = vmatmul.f32.gmra.mxu0 %v47
    %v111 = vpop.f32.mrf.mxu0
    %v112 = vadd.f32 0.0, %v111
    %113 = vmatmul.f32.gmra.mxu0 %v50
    %v114 = vpop.f32.mrf.mxu0
    %v115 = vadd.f32 0.0, %v114
    %116 = vmatmul.f32.gmra.mxu0 %v53
    %v117 = vpop.f32.mrf.mxu0
    %v118 = vadd.f32 0.0, %v117
    %119 = vmatmul.f32.gmra.mxu0 %v56
    %v120 = vpop.f32.mrf.mxu0
    %v121 = vadd.f32 0.0, %v120
    %122 = vmatmul.f32.gmra.mxu0 %v59
    %v123 = vpop.f32.mrf.mxu0
    %v124 = vadd.f32 0.0, %v123
    %125 = vmatmul.f32.gmra.mxu0 %v62
    %v126 = vpop.f32.mrf.mxu0
    %v127 = vadd.f32 0.0, %v126
    %128 = vmatmul.f32.gmra.mxu0 %v65
    %v129 = vpop.f32.mrf.mxu0
    %v130 = vadd.f32 0.0, %v129
    %131 = vmatmul.f32.gmra.mxu0 %v68
    %v132 = vpop.f32.mrf.mxu0
    %v133 = vadd.f32 0.0, %v132
    %134 = vmatmul.f32.gmra.mxu0 %v71
    %v135 = vpop.f32.mrf.mxu0
    %v136 = vadd.f32 0.0, %v135
    %137 = vmatmul.f32.gmra.mxu0 %v74
    %v138 = vpop.f32.mrf.mxu0
    %v139 = vadd.f32 0.0, %v138
    %140 = vmatmul.f32.gmra.mxu0 %v77
    %v141 = vpop.f32.mrf.mxu0
    %v142 = vadd.f32 0.0, %v141
    %143 = vmatmul.f32.gmra.mxu0 %v80
    %v144 = vpop.f32.mrf.mxu0
    %v145 = vadd.f32 0.0, %v144
    %146 = vdwg.mxu0
    %147 = vxpose.xlu0.b32.start [1/16] %v100, 128
    %148 = vxpose.xlu0.b32.cont [2/16] %v103, 128
    %149 = vxpose.xlu0.b32.cont [3/16] 0.0, 128
    %150 = vxpose.xlu0.b32.cont [4/16] 0.0, 128
    %151 = vxpose.xlu0.b32.cont [5/16] 0.0, 128
    %152 = vxpose.xlu0.b32.cont [6/16] 0.0, 128
    %153 = vxpose.xlu0.b32.cont [7/16] 0.0, 128
    %154 = vxpose.xlu0.b32.cont [8/16] 0.0, 128
    %155 = vxpose.xlu0.b32.cont [9/16] 0.0, 128
    %156 = vxpose.xlu0.b32.cont [10/16] 0.0, 128
    %157 = vxpose.xlu0.b32.cont [11/16] 0.0, 128
    %158 = vxpose.xlu0.b32.cont [12/16] 0.0, 128
    %159 = vxpose.xlu0.b32.cont [13/16] 0.0, 128
    %160 = vxpose.xlu0.b32.cont [14/16] 0.0, 128
    %161 = vxpose.xlu0.b32.cont [15/16] 0.0, 128
    %162 = vxpose.xlu0.b32.end [16/16] 0.0, 128
    %v163 = vpop.trf.xlu0
    %v164 = vpop.trf.xlu0
    %v165 = vpop.trf.xlu0
    %v166 = vpop.trf.xlu0
    %v167 = vpop.trf.xlu0
    %v168 = vpop.trf.xlu0
    %v169 = vpop.trf.xlu0
    %v170 = vpop.trf.xlu0
    %v171 = vpop.trf.xlu0
    %v172 = vpop.trf.xlu0
    %v173 = vpop.trf.xlu0
    %v174 = vpop.trf.xlu0
    %v175 = vpop.trf.xlu0
    %v176 = vpop.trf.xlu0
    %v177 = vpop.trf.xlu0
    %v178 = vpop.trf.xlu0
    %179 = vxpose.xlu0.b32.start [1/16] %v106, 128
    %180 = vxpose.xlu0.b32.cont [2/16] %v109, 128
    %181 = vxpose.xlu0.b32.cont [3/16] 0.0, 128
    %182 = vxpose.xlu0.b32.cont [4/16] 0.0, 128
    %183 = vxpose.xlu0.b32.cont [5/16] 0.0, 128
    %184 = vxpose.xlu0.b32.cont [6/16] 0.0, 128
    %185 = vxpose.xlu0.b32.cont [7/16] 0.0, 128
    %186 = vxpose.xlu0.b32.cont [8/16] 0.0, 128
    %187 = vxpose.xlu0.b32.cont [9/16] 0.0, 128
    %188 = vxpose.xlu0.b32.cont [10/16] 0.0, 128
    %189 = vxpose.xlu0.b32.cont [11/16] 0.0, 128
    %190 = vxpose.xlu0.b32.cont [12/16] 0.0, 128
    %191 = vxpose.xlu0.b32.cont [13/16] 0.0, 128
    %192 = vxpose.xlu0.b32.cont [14/16] 0.0, 128
    %193 = vxpose.xlu0.b32.cont [15/16] 0.0, 128
    %194 = vxpose.xlu0.b32.end [16/16] 0.0, 128
    %v195 = vpop.trf.xlu0
    %v196 = vpop.trf.xlu0
    %v197 = vpop.trf.xlu0
    %v198 = vpop.trf.xlu0
    %v199 = vpop.trf.xlu0
    %v200 = vpop.trf.xlu0
    %v201 = vpop.trf.xlu0
    %v202 = vpop.trf.xlu0
    %v203 = vpop.trf.xlu0
    %v204 = vpop.trf.xlu0
    %v205 = vpop.trf.xlu0
    %v206 = vpop.trf.xlu0
    %v207 = vpop.trf.xlu0
    %v208 = vpop.trf.xlu0
    %v209 = vpop.trf.xlu0
    %v210 = vpop.trf.xlu0
    %211 = vxpose.xlu0.b32.start [1/16] %v112, 128
    %212 = vxpose.xlu0.b32.cont [2/16] %v115, 128
    %213 = vxpose.xlu0.b32.cont [3/16] 0.0, 128
    %214 = vxpose.xlu0.b32.cont [4/16] 0.0, 128
    %215 = vxpose.xlu0.b32.cont [5/16] 0.0, 128
    %216 = vxpose.xlu0.b32.cont [6/16] 0.0, 128
    %217 = vxpose.xlu0.b32.cont [7/16] 0.0, 128
    %218 = vxpose.xlu0.b32.cont [8/16] 0.0, 128
    %219 = vxpose.xlu0.b32.cont [9/16] 0.0, 128
    %220 = vxpose.xlu0.b32.cont [10/16] 0.0, 128
    %221 = vxpose.xlu0.b32.cont [11/16] 0.0, 128
    %222 = vxpose.xlu0.b32.cont [12/16] 0.0, 128
    %223 = vxpose.xlu0.b32.cont [13/16] 0.0, 128
    %224 = vxpose.xlu0.b32.cont [14/16] 0.0, 128
    %225 = vxpose.xlu0.b32.cont [15/16] 0.0, 128
    %226 = vxpose.xlu0.b32.end [16/16] 0.0, 128
    %v227 = vpop.trf.xlu0
    %v228 = vpop.trf.xlu0
    %v229 = vpop.trf.xlu0
    %v230 = vpop.trf.xlu0
    %v231 = vpop.trf.xlu0
    %v232 = vpop.trf.xlu0
    %v233 = vpop.trf.xlu0
    %v234 = vpop.trf.xlu0
    %v235 = vpop.trf.xlu0
    %v236 = vpop.trf.xlu0
    %v237 = vpop.trf.xlu0
    %v238 = vpop.trf.xlu0
    %v239 = vpop.trf.xlu0
    %v240 = vpop.trf.xlu0
    %v241 = vpop.trf.xlu0
    %v242 = vpop.trf.xlu0
    %243 = vxpose.xlu0.b32.start [1/16] %v118, 128
    %244 = vxpose.xlu0.b32.cont [2/16] %v121, 128
    %245 = vxpose.xlu0.b32.cont [3/16] 0.0, 128
    %246 = vxpose.xlu0.b32.cont [4/16] 0.0, 128
    %247 = vxpose.xlu0.b32.cont [5/16] 0.0, 128
    %248 = vxpose.xlu0.b32.cont [6/16] 0.0, 128
    %249 = vxpose.xlu0.b32.cont [7/16] 0.0, 128
    %250 = vxpose.xlu0.b32.cont [8/16] 0.0, 128
    %251 = vxpose.xlu0.b32.cont [9/16] 0.0, 128
    %252 = vxpose.xlu0.b32.cont [10/16] 0.0, 128
    %253 = vxpose.xlu0.b32.cont [11/16] 0.0, 128
    %254 = vxpose.xlu0.b32.cont [12/16] 0.0, 128
    %255 = vxpose.xlu0.b32.cont [13/16] 0.0, 128
    %256 = vxpose.xlu0.b32.cont [14/16] 0.0, 128
    %257 = vxpose.xlu0.b32.cont [15/16] 0.0, 128
    %258 = vxpose.xlu0.b32.end [16/16] 0.0, 128
    %v259 = vpop.trf.xlu0
    %v260 = vpop.trf.xlu0
    %v261 = vpop.trf.xlu0
    %v262 = vpop.trf.xlu0
    %v263 = vpop.trf.xlu0
    %v264 = vpop.trf.xlu0
    %v265 = vpop.trf.xlu0
    %v266 = vpop.trf.xlu0
    %v267 = vpop.trf.xlu0
    %v268 = vpop.trf.xlu0
    %v269 = vpop.trf.xlu0
    %v270 = vpop.trf.xlu0
    %v271 = vpop.trf.xlu0
    %v272 = vpop.trf.xlu0
    %v273 = vpop.trf.xlu0
    %v274 = vpop.trf.xlu0
    %275 = vxpose.xlu0.b32.start [1/16] %v124, 128
    %276 = vxpose.xlu0.b32.cont [2/16] %v127, 128
    %277 = vxpose.xlu0.b32.cont [3/16] 0.0, 128
    %278 = vxpose.xlu0.b32.cont [4/16] 0.0, 128
    %279 = vxpose.xlu0.b32.cont [5/16] 0.0, 128
    %280 = vxpose.xlu0.b32.cont [6/16] 0.0, 128
    %281 = vxpose.xlu0.b32.cont [7/16] 0.0, 128
    %282 = vxpose.xlu0.b32.cont [8/16] 0.0, 128
    %283 = vxpose.xlu0.b32.cont [9/16] 0.0, 128
    %284 = vxpose.xlu0.b32.cont [10/16] 0.0, 128
    %285 = vxpose.xlu0.b32.cont [11/16] 0.0, 128
    %286 = vxpose.xlu0.b32.cont [12/16] 0.0, 128
    %287 = vxpose.xlu0.b32.cont [13/16] 0.0, 128
    %288 = vxpose.xlu0.b32.cont [14/16] 0.0, 128
    %289 = vxpose.xlu0.b32.cont [15/16] 0.0, 128
    %290 = vxpose.xlu0.b32.end [16/16] 0.0, 128
    %v291 = vpop.trf.xlu0
    %v292 = vpop.trf.xlu0
    %v293 = vpop.trf.xlu0
    %v294 = vpop.trf.xlu0
    %v295 = vpop.trf.xlu0
    %v296 = vpop.trf.xlu0
    %v297 = vpop.trf.xlu0
    %v298 = vpop.trf.xlu0
    %v299 = vpop.trf.xlu0
    %v300 = vpop.trf.xlu0
    %v301 = vpop.trf.xlu0
    %v302 = vpop.trf.xlu0
    %v303 = vpop.trf.xlu0
    %v304 = vpop.trf.xlu0
    %v305 = vpop.trf.xlu0
    %v306 = vpop.trf.xlu0
    %307 = vxpose.xlu0.b32.start [1/16] %v130, 128
    %308 = vxpose.xlu0.b32.cont [2/16] %v133, 128
    %309 = vxpose.xlu0.b32.cont [3/16] 0.0, 128
    %310 = vxpose.xlu0.b32.cont [4/16] 0.0, 128
    %311 = vxpose.xlu0.b32.cont [5/16] 0.0, 128
    %312 = vxpose.xlu0.b32.cont [6/16] 0.0, 128
    %313 = vxpose.xlu0.b32.cont [7/16] 0.0, 128
    %314 = vxpose.xlu0.b32.cont [8/16] 0.0, 128
    %315 = vxpose.xlu0.b32.cont [9/16] 0.0, 128
    %316 = vxpose.xlu0.b32.cont [10/16] 0.0, 128
    %317 = vxpose.xlu0.b32.cont [11/16] 0.0, 128
    %318 = vxpose.xlu0.b32.cont [12/16] 0.0, 128
    %319 = vxpose.xlu0.b32.cont [13/16] 0.0, 128
    %320 = vxpose.xlu0.b32.cont [14/16] 0.0, 128
    %321 = vxpose.xlu0.b32.cont [15/16] 0.0, 128
    %322 = vxpose.xlu0.b32.end [16/16] 0.0, 128
    %v323 = vpop.trf.xlu0
    %v324 = vpop.trf.xlu0
    %v325 = vpop.trf.xlu0
    %v326 = vpop.trf.xlu0
    %v327 = vpop.trf.xlu0
    %v328 = vpop.trf.xlu0
    %v329 = vpop.trf.xlu0
    %v330 = vpop.trf.xlu0
    %v331 = vpop.trf.xlu0
    %v332 = vpop.trf.xlu0
    %v333 = vpop.trf.xlu0
    %v334 = vpop.trf.xlu0
    %v335 = vpop.trf.xlu0
    %v336 = vpop.trf.xlu0
    %v337 = vpop.trf.xlu0
    %v338 = vpop.trf.xlu0
    %339 = vxpose.xlu0.b32.start [1/16] %v136, 128
    %340 = vxpose.xlu0.b32.cont [2/16] %v139, 128
    %341 = vxpose.xlu0.b32.cont [3/16] 0.0, 128
    %342 = vxpose.xlu0.b32.cont [4/16] 0.0, 128
    %343 = vxpose.xlu0.b32.cont [5/16] 0.0, 128
    %344 = vxpose.xlu0.b32.cont [6/16] 0.0, 128
    %345 = vxpose.xlu0.b32.cont [7/16] 0.0, 128
    %346 = vxpose.xlu0.b32.cont [8/16] 0.0, 128
    %347 = vxpose.xlu0.b32.cont [9/16] 0.0, 128
    %348 = vxpose.xlu0.b32.cont [10/16] 0.0, 128
    %349 = vxpose.xlu0.b32.cont [11/16] 0.0, 128
    %350 = vxpose.xlu0.b32.cont [12/16] 0.0, 128
    %351 = vxpose.xlu0.b32.cont [13/16] 0.0, 128
    %352 = vxpose.xlu0.b32.cont [14/16] 0.0, 128
    %353 = vxpose.xlu0.b32.cont [15/16] 0.0, 128
    %354 = vxpose.xlu0.b32.end [16/16] 0.0, 128
    %v355 = vpop.trf.xlu0
    %v356 = vpop.trf.xlu0
    %v357 = vpop.trf.xlu0
    %v358 = vpop.trf.xlu0
    %v359 = vpop.trf.xlu0
    %v360 = vpop.trf.xlu0
    %v361 = vpop.trf.xlu0
    %v362 = vpop.trf.xlu0
    %v363 = vpop.trf.xlu0
    %v364 = vpop.trf.xlu0
    %v365 = vpop.trf.xlu0
    %v366 = vpop.trf.xlu0
    %v367 = vpop.trf.xlu0
    %v368 = vpop.trf.xlu0
    %v369 = vpop.trf.xlu0
    %v370 = vpop.trf.xlu0
    %371 = vxpose.xlu0.b32.start [1/16] %v142, 128
    %372 = vxpose.xlu0.b32.cont [2/16] %v145, 128
    %373 = vxpose.xlu0.b32.cont [3/16] 0.0, 128
    %374 = vxpose.xlu0.b32.cont [4/16] 0.0, 128
    %375 = vxpose.xlu0.b32.cont [5/16] 0.0, 128
    %376 = vxpose.xlu0.b32.cont [6/16] 0.0, 128
    %377 = vxpose.xlu0.b32.cont [7/16] 0.0, 128
    %378 = vxpose.xlu0.b32.cont [8/16] 0.0, 128
    %379 = vxpose.xlu0.b32.cont [9/16] 0.0, 128
    %380 = vxpose.xlu0.b32.cont [10/16] 0.0, 128
    %381 = vxpose.xlu0.b32.cont [11/16] 0.0, 128
    %382 = vxpose.xlu0.b32.cont [12/16] 0.0, 128
    %383 = vxpose.xlu0.b32.cont [13/16] 0.0, 128
    %384 = vxpose.xlu0.b32.cont [14/16] 0.0, 128
    %385 = vxpose.xlu0.b32.cont [15/16] 0.0, 128
    %386 = vxpose.xlu0.b32.end [16/16] 0.0, 128
    %v387 = vpop.trf.xlu0
    %v388 = vpop.trf.xlu0
    %v389 = vpop.trf.xlu0
    %v390 = vpop.trf.xlu0
    %v391 = vpop.trf.xlu0
    %v392 = vpop.trf.xlu0
    %v393 = vpop.trf.xlu0
    %v394 = vpop.trf.xlu0
    %v395 = vpop.trf.xlu0
    %v396 = vpop.trf.xlu0
    %v397 = vpop.trf.xlu0
    %v398 = vpop.trf.xlu0
    %v399 = vpop.trf.xlu0
    %v400 = vpop.trf.xlu0
    %v401 = vpop.trf.xlu0
    %v402 = vpop.trf.xlu0
    %v403 = vld [vmem:[%s2] sm:$0xff]
    %v404 = vld [vmem:[%s2 + $0x8] sm:$0xff]
    %v406 = vsel %vm33, %v163, 0
    %v409 = vsel %vm33, %v195, 0
    %v412 = vsel %vm33, %v227, 0
    %v415 = vsel %vm33, %v259, 0
    %v418 = vsel %vm33, %v291, 0
    %v421 = vsel %vm33, %v323, 0
    %v424 = vsel %vm33, %v355, 0
    %v427 = vsel %vm33, %v387, 0
    %429 = vmatpush.msra.mxu0 0.0
    %430 = vmatpush.msra.mxu0 0.0
    %431 = vmatpush.msra.mxu0 0.0
    %432 = vmatpush.msra.mxu0 0.0
    %433 = vmatpush.msra.mxu0 0.0
    %434 = vmatpush.msra.mxu0 0.0
    %435 = vmatpush.msra.mxu0 0.0
    %436 = vmatpush.msra.mxu0 0.0
    %437 = vmatpush.msra.mxu0 0.0
    %438 = vmatpush.msra.mxu0 0.0
    %439 = vmatpush.msra.mxu0 0.0
    %440 = vmatpush.msra.mxu0 0.0
    %441 = vmatpush.msra.mxu0 0.0
    %442 = vmatpush.msra.mxu0 0.0
    %443 = vmatpush.msra.mxu0 %v404
    %444 = vmatpush.msra.mxu0 %v403
    %445 = vmatmul.f32.gmra.mxu0 %v406
    %v446 = vpop.f32.mrf.mxu0
    %v447 = vadd.f32 0.0, %v446
    %448 = vmatmul.f32.gmra.mxu0 %v409
    %v449 = vpop.f32.mrf.mxu0
    %v450 = vadd.f32 0.0, %v449
    %451 = vmatmul.f32.gmra.mxu0 %v412
    %v452 = vpop.f32.mrf.mxu0
    %v453 = vadd.f32 0.0, %v452
    %454 = vmatmul.f32.gmra.mxu0 %v415
    %v455 = vpop.f32.mrf.mxu0
    %v456 = vadd.f32 0.0, %v455
    %457 = vmatmul.f32.gmra.mxu0 %v418
    %v458 = vpop.f32.mrf.mxu0
    %v459 = vadd.f32 0.0, %v458
    %460 = vmatmul.f32.gmra.mxu0 %v421
    %v461 = vpop.f32.mrf.mxu0
    %v462 = vadd.f32 0.0, %v461
    %463 = vmatmul.f32.gmra.mxu0 %v424
    %v464 = vpop.f32.mrf.mxu0
    %v465 = vadd.f32 0.0, %v464
    %466 = vmatmul.f32.gmra.mxu0 %v427
    %v467 = vpop.f32.mrf.mxu0
    %v468 = vadd.f32 0.0, %v467
    %469 = vdwg.mxu0
    %470 = vxpose.xlu0.b32.start [1/16] %v447, 128
    %471 = vxpose.xlu0.b32.cont [2/16] 0.0, 128
    %472 = vxpose.xlu0.b32.cont [3/16] 0.0, 128
    %473 = vxpose.xlu0.b32.cont [4/16] 0.0, 128
    %474 = vxpose.xlu0.b32.cont [5/16] 0.0, 128
    %475 = vxpose.xlu0.b32.cont [6/16] 0.0, 128
    %476 = vxpose.xlu0.b32.cont [7/16] 0.0, 128
    %477 = vxpose.xlu0.b32.cont [8/16] 0.0, 128
    %478 = vxpose.xlu0.b32.cont [9/16] 0.0, 128
    %479 = vxpose.xlu0.b32.cont [10/16] 0.0, 128
    %480 = vxpose.xlu0.b32.cont [11/16] 0.0, 128
    %481 = vxpose.xlu0.b32.cont [12/16] 0.0, 128
    %482 = vxpose.xlu0.b32.cont [13/16] 0.0, 128
    %483 = vxpose.xlu0.b32.cont [14/16] 0.0, 128
    %484 = vxpose.xlu0.b32.cont [15/16] 0.0, 128
    %485 = vxpose.xlu0.b32.end [16/16] 0.0, 128
    %v486 = vpop.trf.xlu0
    %v487 = vpop.trf.xlu0
    %v488 = vpop.trf.xlu0
    %v489 = vpop.trf.xlu0
    %v490 = vpop.trf.xlu0
    %v491 = vpop.trf.xlu0
    %v492 = vpop.trf.xlu0
    %v493 = vpop.trf.xlu0
    %v494 = vpop.trf.xlu0
    %v495 = vpop.trf.xlu0
    %v496 = vpop.trf.xlu0
    %v497 = vpop.trf.xlu0
    %v498 = vpop.trf.xlu0
    %v499 = vpop.trf.xlu0
    %v500 = vpop.trf.xlu0
    %v501 = vpop.trf.xlu0
    %502 = vxpose.xlu0.b32.start [1/16] %v450, 128
    %503 = vxpose.xlu0.b32.cont [2/16] 0.0, 128
    %504 = vxpose.xlu0.b32.cont [3/16] 0.0, 128
    %505 = vxpose.xlu0.b32.cont [4/16] 0.0, 128
    %506 = vxpose.xlu0.b32.cont [5/16] 0.0, 128
    %507 = vxpose.xlu0.b32.cont [6/16] 0.0, 128
    %508 = vxpose.xlu0.b32.cont [7/16] 0.0, 128
    %509 = vxpose.xlu0.b32.cont [8/16] 0.0, 128
    %510 = vxpose.xlu0.b32.cont [9/16] 0.0, 128
    %511 = vxpose.xlu0.b32.cont [10/16] 0.0, 128
    %512 = vxpose.xlu0.b32.cont [11/16] 0.0, 128
    %513 = vxpose.xlu0.b32.cont [12/16] 0.0, 128
    %514 = vxpose.xlu0.b32.cont [13/16] 0.0, 128
    %515 = vxpose.xlu0.b32.cont [14/16] 0.0, 128
    %516 = vxpose.xlu0.b32.cont [15/16] 0.0, 128
    %517 = vxpose.xlu0.b32.end [16/16] 0.0, 128
    %v518 = vpop.trf.xlu0
    %v519 = vpop.trf.xlu0
    %v520 = vpop.trf.xlu0
    %v521 = vpop.trf.xlu0
    %v522 = vpop.trf.xlu0
    %v523 = vpop.trf.xlu0
    %v524 = vpop.trf.xlu0
    %v525 = vpop.trf.xlu0
    %v526 = vpop.trf.xlu0
    %v527 = vpop.trf.xlu0
    %v528 = vpop.trf.xlu0
    %v529 = vpop.trf.xlu0
    %v530 = vpop.trf.xlu0
    %v531 = vpop.trf.xlu0
    %v532 = vpop.trf.xlu0
    %v533 = vpop.trf.xlu0
    %534 = vxpose.xlu0.b32.start [1/16] %v453, 128
    %535 = vxpose.xlu0.b32.cont [2/16] 0.0, 128
    %536 = vxpose.xlu0.b32.cont [3/16] 0.0, 128
    %537 = vxpose.xlu0.b32.cont [4/16] 0.0, 128
    %538 = vxpose.xlu0.b32.cont [5/16] 0.0, 128
    %539 = vxpose.xlu0.b32.cont [6/16] 0.0, 128
    %540 = vxpose.xlu0.b32.cont [7/16] 0.0, 128
    %541 = vxpose.xlu0.b32.cont [8/16] 0.0, 128
    %542 = vxpose.xlu0.b32.cont [9/16] 0.0, 128
    %543 = vxpose.xlu0.b32.cont [10/16] 0.0, 128
    %544 = vxpose.xlu0.b32.cont [11/16] 0.0, 128
    %545 = vxpose.xlu0.b32.cont [12/16] 0.0, 128
    %546 = vxpose.xlu0.b32.cont [13/16] 0.0, 128
    %547 = vxpose.xlu0.b32.cont [14/16] 0.0, 128
    %548 = vxpose.xlu0.b32.cont [15/16] 0.0, 128
    %549 = vxpose.xlu0.b32.end [16/16] 0.0, 128
    %v550 = vpop.trf.xlu0
    %v551 = vpop.trf.xlu0
    %v552 = vpop.trf.xlu0
    %v553 = vpop.trf.xlu0
    %v554 = vpop.trf.xlu0
    %v555 = vpop.trf.xlu0
    %v556 = vpop.trf.xlu0
    %v557 = vpop.trf.xlu0
    %v558 = vpop.trf.xlu0
    %v559 = vpop.trf.xlu0
    %v560 = vpop.trf.xlu0
    %v561 = vpop.trf.xlu0
    %v562 = vpop.trf.xlu0
    %v563 = vpop.trf.xlu0
    %v564 = vpop.trf.xlu0
    %v565 = vpop.trf.xlu0
    %566 = vxpose.xlu0.b32.start [1/16] %v456, 128
    %567 = vxpose.xlu0.b32.cont [2/16] 0.0, 128
    %568 = vxpose.xlu0.b32.cont [3/16] 0.0, 128
    %569 = vxpose.xlu0.b32.cont [4/16] 0.0, 128
    %570 = vxpose.xlu0.b32.cont [5/16] 0.0, 128
    %571 = vxpose.xlu0.b32.cont [6/16] 0.0, 128
    %572 = vxpose.xlu0.b32.cont [7/16] 0.0, 128
    %573 = vxpose.xlu0.b32.cont [8/16] 0.0, 128
    %574 = vxpose.xlu0.b32.cont [9/16] 0.0, 128
    %575 = vxpose.xlu0.b32.cont [10/16] 0.0, 128
    %576 = vxpose.xlu0.b32.cont [11/16] 0.0, 128
    %577 = vxpose.xlu0.b32.cont [12/16] 0.0, 128
    %578 = vxpose.xlu0.b32.cont [13/16] 0.0, 128
    %579 = vxpose.xlu0.b32.cont [14/16] 0.0, 128
    %580 = vxpose.xlu0.b32.cont [15/16] 0.0, 128
    %581 = vxpose.xlu0.b32.end [16/16] 0.0, 128
    %v582 = vpop.trf.xlu0
    %v583 = vpop.trf.xlu0
    %v584 = vpop.trf.xlu0
    %v585 = vpop.trf.xlu0
    %v586 = vpop.trf.xlu0
    %v587 = vpop.trf.xlu0
    %v588 = vpop.trf.xlu0
    %v589 = vpop.trf.xlu0
    %v590 = vpop.trf.xlu0
    %v591 = vpop.trf.xlu0
    %v592 = vpop.trf.xlu0
    %v593 = vpop.trf.xlu0
    %v594 = vpop.trf.xlu0
    %v595 = vpop.trf.xlu0
    %v596 = vpop.trf.xlu0
    %v597 = vpop.trf.xlu0
    %598 = vxpose.xlu0.b32.start [1/16] %v459, 128
    %599 = vxpose.xlu0.b32.cont [2/16] 0.0, 128
    %600 = vxpose.xlu0.b32.cont [3/16] 0.0, 128
    %601 = vxpose.xlu0.b32.cont [4/16] 0.0, 128
    %602 = vxpose.xlu0.b32.cont [5/16] 0.0, 128
    %603 = vxpose.xlu0.b32.cont [6/16] 0.0, 128
    %604 = vxpose.xlu0.b32.cont [7/16] 0.0, 128
    %605 = vxpose.xlu0.b32.cont [8/16] 0.0, 128
    %606 = vxpose.xlu0.b32.cont [9/16] 0.0, 128
    %607 = vxpose.xlu0.b32.cont [10/16] 0.0, 128
    %608 = vxpose.xlu0.b32.cont [11/16] 0.0, 128
    %609 = vxpose.xlu0.b32.cont [12/16] 0.0, 128
    %610 = vxpose.xlu0.b32.cont [13/16] 0.0, 128
    %611 = vxpose.xlu0.b32.cont [14/16] 0.0, 128
    %612 = vxpose.xlu0.b32.cont [15/16] 0.0, 128
    %613 = vxpose.xlu0.b32.end [16/16] 0.0, 128
    %v614 = vpop.trf.xlu0
    %v615 = vpop.trf.xlu0
    %v616 = vpop.trf.xlu0
    %v617 = vpop.trf.xlu0
    %v618 = vpop.trf.xlu0
    %v619 = vpop.trf.xlu0
    %v620 = vpop.trf.xlu0
    %v621 = vpop.trf.xlu0
    %v622 = vpop.trf.xlu0
    %v623 = vpop.trf.xlu0
    %v624 = vpop.trf.xlu0
    %v625 = vpop.trf.xlu0
    %v626 = vpop.trf.xlu0
    %v627 = vpop.trf.xlu0
    %v628 = vpop.trf.xlu0
    %v629 = vpop.trf.xlu0
    %630 = vxpose.xlu0.b32.start [1/16] %v462, 128
    %631 = vxpose.xlu0.b32.cont [2/16] 0.0, 128
    %632 = vxpose.xlu0.b32.cont [3/16] 0.0, 128
    %633 = vxpose.xlu0.b32.cont [4/16] 0.0, 128
    %634 = vxpose.xlu0.b32.cont [5/16] 0.0, 128
    %635 = vxpose.xlu0.b32.cont [6/16] 0.0, 128
    %636 = vxpose.xlu0.b32.cont [7/16] 0.0, 128
    %637 = vxpose.xlu0.b32.cont [8/16] 0.0, 128
    %638 = vxpose.xlu0.b32.cont [9/16] 0.0, 128
    %639 = vxpose.xlu0.b32.cont [10/16] 0.0, 128
    %640 = vxpose.xlu0.b32.cont [11/16] 0.0, 128
    %641 = vxpose.xlu0.b32.cont [12/16] 0.0, 128
    %642 = vxpose.xlu0.b32.cont [13/16] 0.0, 128
    %643 = vxpose.xlu0.b32.cont [14/16] 0.0, 128
    %644 = vxpose.xlu0.b32.cont [15/16] 0.0, 128
    %645 = vxpose.xlu0.b32.end [16/16] 0.0, 128
    %v646 = vpop.trf.xlu0
    %v647 = vpop.trf.xlu0
    %v648 = vpop.trf.xlu0
    %v649 = vpop.trf.xlu0
    %v650 = vpop.trf.xlu0
    %v651 = vpop.trf.xlu0
    %v652 = vpop.trf.xlu0
    %v653 = vpop.trf.xlu0
    %v654 = vpop.trf.xlu0
    %v655 = vpop.trf.xlu0
    %v656 = vpop.trf.xlu0
    %v657 = vpop.trf.xlu0
    %v658 = vpop.trf.xlu0
    %v659 = vpop.trf.xlu0
    %v660 = vpop.trf.xlu0
    %v661 = vpop.trf.xlu0
    %662 = vxpose.xlu0.b32.start [1/16] %v465, 128
    %663 = vxpose.xlu0.b32.cont [2/16] 0.0, 128
    %664 = vxpose.xlu0.b32.cont [3/16] 0.0, 128
    %665 = vxpose.xlu0.b32.cont [4/16] 0.0, 128
    %666 = vxpose.xlu0.b32.cont [5/16] 0.0, 128
    %667 = vxpose.xlu0.b32.cont [6/16] 0.0, 128
    %668 = vxpose.xlu0.b32.cont [7/16] 0.0, 128
    %669 = vxpose.xlu0.b32.cont [8/16] 0.0, 128
    %670 = vxpose.xlu0.b32.cont [9/16] 0.0, 128
    %671 = vxpose.xlu0.b32.cont [10/16] 0.0, 128
    %672 = vxpose.xlu0.b32.cont [11/16] 0.0, 128
    %673 = vxpose.xlu0.b32.cont [12/16] 0.0, 128
    %674 = vxpose.xlu0.b32.cont [13/16] 0.0, 128
    %675 = vxpose.xlu0.b32.cont [14/16] 0.0, 128
    %676 = vxpose.xlu0.b32.cont [15/16] 0.0, 128
    %677 = vxpose.xlu0.b32.end [16/16] 0.0, 128
    %v678 = vpop.trf.xlu0
    %v679 = vpop.trf.xlu0
    %v680 = vpop.trf.xlu0
    %v681 = vpop.trf.xlu0
    %v682 = vpop.trf.xlu0
    %v683 = vpop.trf.xlu0
    %v684 = vpop.trf.xlu0
    %v685 = vpop.trf.xlu0
    %v686 = vpop.trf.xlu0
    %v687 = vpop.trf.xlu0
    %v688 = vpop.trf.xlu0
    %v689 = vpop.trf.xlu0
    %v690 = vpop.trf.xlu0
    %v691 = vpop.trf.xlu0
    %v692 = vpop.trf.xlu0
    %v693 = vpop.trf.xlu0
    %694 = vxpose.xlu0.b32.start [1/16] %v468, 128
    %695 = vxpose.xlu0.b32.cont [2/16] 0.0, 128
    %696 = vxpose.xlu0.b32.cont [3/16] 0.0, 128
    %697 = vxpose.xlu0.b32.cont [4/16] 0.0, 128
    %698 = vxpose.xlu0.b32.cont [5/16] 0.0, 128
    %699 = vxpose.xlu0.b32.cont [6/16] 0.0, 128
    %700 = vxpose.xlu0.b32.cont [7/16] 0.0, 128
    %701 = vxpose.xlu0.b32.cont [8/16] 0.0, 128
    %702 = vxpose.xlu0.b32.cont [9/16] 0.0, 128
    %703 = vxpose.xlu0.b32.cont [10/16] 0.0, 128
    %704 = vxpose.xlu0.b32.cont [11/16] 0.0, 128
    %705 = vxpose.xlu0.b32.cont [12/16] 0.0, 128
    %706 = vxpose.xlu0.b32.cont [13/16] 0.0, 128
    %707 = vxpose.xlu0.b32.cont [14/16] 0.0, 128
    %708 = vxpose.xlu0.b32.cont [15/16] 0.0, 128
    %709 = vxpose.xlu0.b32.end [16/16] 0.0, 128
    %v710 = vpop.trf.xlu0
    %v711 = vpop.trf.xlu0
    %v712 = vpop.trf.xlu0
    %v713 = vpop.trf.xlu0
    %v714 = vpop.trf.xlu0
    %v715 = vpop.trf.xlu0
    %v716 = vpop.trf.xlu0
    %v717 = vpop.trf.xlu0
    %v718 = vpop.trf.xlu0
    %v719 = vpop.trf.xlu0
    %v720 = vpop.trf.xlu0
    %v721 = vpop.trf.xlu0
    %v722 = vpop.trf.xlu0
    %v723 = vpop.trf.xlu0
    %v724 = vpop.trf.xlu0
    %v725 = vpop.trf.xlu0
    %vm726 = vcmask 64512
    %727 = vst.msk [vmem:[#allocation2] sm:$0xff] %vm726, %v486
    %728 = vst.msk [vmem:[#allocation2 + $0x8] sm:$0xff] %vm726, %v518
    %729 = vst.msk [vmem:[#allocation2 + $0x10] sm:$0xff] %vm726, %v550
    %730 = vst.msk [vmem:[#allocation2 + $0x18] sm:$0xff] %vm726, %v582
    %731 = vst.msk [vmem:[#allocation2 + $0x20] sm:$0xff] %vm726, %v614
    %732 = vst.msk [vmem:[#allocation2 + $0x28] sm:$0xff] %vm726, %v646
    %733 = vst.msk [vmem:[#allocation2 + $0x30] sm:$0xff] %vm726, %v678
    %734 = vst.msk [vmem:[#allocation2 + $0x38] sm:$0xff] %vm726, %v710
    // Predicated region
    $region14: #{tpu_custom_call.1} parent=1 // pred_check
      _
    $region15: #{tpu_custom_call.1} parent=1 // pred_check_branch
      %736 = sbr.rel (0) target = $region17
    $region16: #{tpu_custom_call.1} parent=1 // pred_region
      %738 = vsyncadd [#allocation3], 0
      %s739 = sshll.u32 [#allocation2], 4
      %s740 = int_to_ptr.vmem [resolvable:$true] %s739
      %s741 = sshll.u32 %s3, 4
      %s742 = int_to_ptr.hbm [resolvable:$true] %s741
      %747 = dma.vmem_to_hbm [thread:$0]  %s740, 1024, %s742, [#allocation3], 128, 128, 8
    $region17: #{tpu_custom_call.1} parent=1 // pred_fallthru
      _
    // Predicated region
    $region18: #{tpu_custom_call.1} parent=1 // pred_check
      _
    $region19: #{tpu_custom_call.1} parent=1 // pred_check_branch
      %749 = sbr.rel (0) target = $region21
    $region20: #{tpu_custom_call.1} parent=1 // pred_region
      %751 = dma.done [#allocation3], 1024
    $region21: #{tpu_custom_call.1} parent=1 // pred_fallthru
      _
    %752 = vsyncpa [#allocation3], 1

</llo_original>
